<compile_context>
chip_gen: v7x
topology: tpu7x:2x2x1
jax: 0.10.0
libtpu: 0.0.40
codegen_flags: <defaults>
</compile_context>

<pallas_src>
from dataclasses import dataclass
from typing import Optional

import jax
import jax.numpy as jnp
from jax.experimental import pallas as pl
from jax.experimental.pallas import tpu as pltpu


# ----------------------------------------------------------------------------
# FFN hidden-dim rule (matches the PyTorch FeedForward.__init__)
# ----------------------------------------------------------------------------
def ffn_hidden_dim(intermediate_size: int, multiple_of: int,
                   ffn_dim_multiplier: Optional[float]) -> int:
    intermediate_size = int(2 * intermediate_size / 3)
    if ffn_dim_multiplier is not None:
        intermediate_size = int(ffn_dim_multiplier * intermediate_size)
    return multiple_of * ((intermediate_size + multiple_of - 1) // multiple_of)


# ----------------------------------------------------------------------------
# Pallas kernel: fused SwiGLU FFN, F-axis reduction accumulated in the f32 output tile
# ----------------------------------------------------------------------------
def ffn_kernel(x_ref, w13_ref, w2_ref, o_ref):
    # x_ref  : (tm, D)      f32   (cast to bf16 in-kernel)
    # w13_ref: (2, D, tf)   bf16  ([0] = w1^T tile, [1] = w3^T tile, one DMA stream)
    # w2_ref : (tf, D)      bf16
    # o_ref  : (tm, D)      f32   (resident across the f axis -> accumulator)
    f = pl.program_id(1)

    x = x_ref[...].astype(jnp.bfloat16)
    # MXU matmuls in bf16 with f32 accumulation.
    h1 = jnp.dot(x, w13_ref[0], preferred_element_type=jnp.float32)   # (tm, tf)
    h3 = jnp.dot(x, w13_ref[1], preferred_element_type=jnp.float32)   # (tm, tf)
    # SiLU * gate epilogue in f32 (VPU/EUP), cast back to bf16 for the w2 dot.
    g = (h1 * jax.nn.sigmoid(h1)) * h3
    partial = jnp.dot(g.astype(jnp.bfloat16), w2_ref[...],
                      preferred_element_type=jnp.float32)             # (tm, D)

    @pl.when(f == 0)
    def _init():
        o_ref[...] = partial

    @pl.when(f > 0)
    def _acc():
        o_ref[...] += partial


# ----------------------------------------------------------------------------
# Tile / VMEM helpers
# ----------------------------------------------------------------------------
def _round_up(x: int, m: int) -> int:
    return ((x + m - 1) // m) * m


def _cdiv(a: int, b: int) -> int:
    return (a + b - 1) // b


def _pick_tile(total: int, preferred: int, granule: int) -> int:
    """Largest multiple of `granule` that divides `total` and is <= preferred.
    `total` is always a multiple of `granule` here, so this never falls back."""
    if total <= preferred:
        return total
    t = (preferred // granule) * granule
    while t >= granule:
        if total % t == 0:
            return t
        t -= granule
    return total


def _select_tm(M: int, tm_pref: int) -> int:
    if M <= 256:
        # decode / small batch: one tile, minimal (8-row) padding
        return max(8, _round_up(min(M, tm_pref), 8))
    # prefill: 128-granule tiles (clean MXU shapes), pad M to the tile,
    # and keep >= 2 M-tiles so the "parallel" axis shards across v7x TensorCores.
    tm = min(_round_up(tm_pref, 128), _round_up(M, 128))
    while tm > 128 and _cdiv(M, tm) < 2:
        tm //= 2
    return max(128, _round_up(tm, 128))


def _vmem_capacity_bytes() -> int:
    try:
        info = pltpu.get_tpu_info()
        cap = getattr(info, "vmem_capacity_bytes", None)
        if cap:
            return int(cap)
    except Exception:
        pass
    return 64 * 1024 * 1024   # conservative fallback: fits v7x's 64 MiB/TC


def _vmem_usage_bytes(tm: int, tf: int, D: int) -> int:
    x_buf = 2 * tm * D * 4          # f32 x tile, double-buffered
    w13_buf = 2 * 2 * D * tf * 2    # bf16 stacked w1||w3 tile, double-buffered
    w2_buf = 2 * tf * D * 2         # bf16 w2 tile, double-buffered
    out_buf = 2 * tm * D * 4        # f32 output tile (resident accumulator)
    interm = 3 * tm * tf * 4        # h1 / h3 / g f32 temporaries (vreg spill headroom)
    return x_buf + w13_buf + w2_buf + out_buf + interm


# ----------------------------------------------------------------------------
# Wrapper
# ----------------------------------------------------------------------------
def feed_forward(x2d: jax.Array, w13: jax.Array, w2_t: jax.Array,
                 *, tm_pref: int = 512, tf_pref: int = 512) -> jax.Array:
    """x2d: (M, D) f32.  w13: (2, D, F_pad) bf16.  w2_t: (F_pad, D) bf16."""
    M, D = x2d.shape
    F_pad = w2_t.shape[0]
    assert w13.shape == (2, D, F_pad)

    # Per-generation VMEM budget (128 MiB on v5e/v6e, 64 MiB per TC on v7x).
    vmem_cap = _vmem_capacity_bytes()
    vmem_limit = max(32 * 2**20, min(int(vmem_cap * 0.85), 112 * 2**20))
    budget = int(vmem_limit * 0.85)

    tm = _select_tm(M, tm_pref)
    tf = _pick_tile(F_pad, max(128, tf_pref), 128)

    # Shrink tiles until the double-buffered working set fits the budget.
    while _vmem_usage_bytes(tm, tf, D) > budget:
        if tm > 128:
            tm = max(128, ((tm // 2) // 8) * 8)
        else:
            new_tf = _pick_tile(F_pad, max(128, tf // 2), 128)
            if new_tf == tf:
                break
            tf = new_tf

    grid_m = _cdiv(M, tm)
    M_pad = grid_m * tm
    x_p = x2d if M_pad == M else jnp.pad(x2d, ((0, M_pad - M), (0, 0)))

    grid = (grid_m, F_pad // tf)

    flops = 6 * M_pad * D * F_pad                     # 3 matmuls of 2*M*D*F
    transcendentals = M_pad * F_pad                   # sigmoid in SiLU
    bytes_accessed = (M_pad * D * 4                   # x (f32) read once
                      + grid_m * 3 * D * F_pad * 2    # w1||w3 + w2 streamed per M-tile
                      + M_pad * D * 4)                # out (f32)

    out = pl.pallas_call(
        ffn_kernel,
        out_shape=jax.ShapeDtypeStruct((M_pad, D), jnp.float32),
        grid_spec=pltpu.PrefetchScalarGridSpec(
            num_scalar_prefetch=0,
            grid=grid,
            in_specs=[
                pl.BlockSpec((tm, D), lambda i, f: (i, 0)),        # x tile (reused over f)
                pl.BlockSpec((2, D, tf), lambda i, f: (0, 0, f)),  # stacked w1^T/w3^T tile
                pl.BlockSpec((tf, D), lambda i, f: (f, 0)),        # w2^T tile
            ],
            out_specs=pl.BlockSpec((tm, D), lambda i, f: (i, 0)),  # resident accumulator
        ),
        compiler_params=pltpu.CompilerParams(
            dimension_semantics=("parallel", "arbitrary"),
            vmem_limit_bytes=vmem_limit,
        ),
        cost_estimate=pl.CostEstimate(
            flops=flops,
            transcendentals=transcendentals,
            bytes_accessed=bytes_accessed,
        ),
    )(x_p, w13, w2_t)

    return out if M_pad == M else out[:M]


# ----------------------------------------------------------------------------
# Module-like parameter container
# ----------------------------------------------------------------------------
@dataclass
class FeedForwardParams:
    w13: jax.Array    # (2, D, F_pad) bf16 : stacked pre-transposed w1 / w3 (one DMA stream)
    w2_t: jax.Array   # (F_pad, D)    bf16 : pre-transposed w2
    w1: jax.Array     # (F, D) f32 (torch.nn.Linear layout, kept for the reference)
    w2: jax.Array     # (D, F) f32
    w3: jax.Array     # (F, D) f32


def init_feed_forward(key, dim: int, intermediate_size: int, multiple_of: int,
                      ffn_dim_multiplier: Optional[float]) -> FeedForwardParams:
    F = ffn_hidden_dim(intermediate_size, multiple_of, ffn_dim_multiplier)
    k1, k2, k3 = jax.random.split(key, 3)
    scale = 0.02
    w1 = scale * jax.random.normal(k1, (F, dim), dtype=jnp.float32)   # (out, in)
    w2 = scale * jax.random.normal(k2, (dim, F), dtype=jnp.float32)
    w3 = scale * jax.random.normal(k3, (F, dim), dtype=jnp.float32)

    # Pre-transpose, zero-pad F to a multiple of 128 (mathematically inert), cast to
    # bf16 and stack w1||w3 ONCE at init -- nothing in the per-call hot path.
    F_pad = _round_up(F, 128)
    pad_f = F_pad - F
    w1_t = jnp.pad(w1.T, ((0, 0), (0, pad_f)))        # (D, F_pad)
    w3_t = jnp.pad(w3.T, ((0, 0), (0, pad_f)))        # (D, F_pad)
    w2_tp = jnp.pad(w2.T, ((0, pad_f), (0, 0)))       # (F_pad, D)
    w13 = jnp.stack([w1_t, w3_t], axis=0).astype(jnp.bfloat16)
    return FeedForwardParams(w13=w13, w2_t=w2_tp.astype(jnp.bfloat16),
                             w1=w1, w2=w2, w3=w3)


def feed_forward_apply(params: FeedForwardParams, x: jax.Array,
                       *, tm_pref: int = 512, tf_pref: int = 512) -> jax.Array:
    """x: (..., D) f32 -> (..., D) f32; same semantics as FeedForward.forward."""
    orig_shape = x.shape
    D = orig_shape[-1]
    x2d = x.reshape(-1, D)
    out = feed_forward(x2d, params.w13, params.w2_t,
                       tm_pref=tm_pref, tf_pref=tf_pref)
    return out.reshape(orig_shape)


# Pure-JAX f32 reference for validation.
def feed_forward_ref(params: FeedForwardParams, x: jax.Array) -> jax.Array:
    h1 = x @ params.w1.T
    h3 = x @ params.w3.T
    g = (h1 * jax.nn.sigmoid(h1)) * h3
    return g @ params.w2.T


# ----------------------------------------------------------------------------
# Main
# ----------------------------------------------------------------------------
if __name__ == "__main__":
    key = jax.random.PRNGKey(0)
    pkey, xkey = jax.random.split(key)

    # Small shapes consistent with the module.
    dim = 128
    intermediate_size = 4 * dim          # like Llama: hidden_dim arg = 4*dim
    multiple_of = 128
    ffn_dim_multiplier = None            # -> F = 384

    params = init_feed_forward(pkey, dim, intermediate_size, multiple_of,
                               ffn_dim_multiplier)

    B, S = 2, 7                          # M = 14: exercises row padding (pad to 16)
    x = jax.random.normal(xkey, (B, S, dim), dtype=jnp.float32)
    ref = feed_forward_ref(params, x)

    # Small tiles: 2 M-tiles (parallel axis) x 3 F-tiles (accumulation path).
    out = feed_forward_apply(params, x, tm_pref=8, tf_pref=128)
    out = jax.block_until_ready(out)
    assert out.shape == (B, S, dim)
    assert bool(jnp.all(jnp.isfinite(out)))
    assert bool(jnp.allclose(out, ref, rtol=2e-2, atol=1e-3)), (
        float(jnp.max(jnp.abs(out - ref))))

    # Default (large) tile preferences: single-tile path.
    out2 = jax.block_until_ready(feed_forward_apply(params, x))
    assert bool(jnp.allclose(out2, ref, rtol=2e-2, atol=1e-3)), (
        float(jnp.max(jnp.abs(out2 - ref))))

    print("KERNEL_OK")
</pallas_src>

<mosaic_0001>
module attributes {stable_mosaic.version = 11 : i64} {
  func.func @ffn_kernel(%arg0: i32, %arg1: i32, %arg2: memref<8x128xf32, #tpu.memory_space<vmem>>, %arg3: memref<2x128x128xbf16, #tpu.memory_space<vmem>>, %arg4: memref<128x128xbf16, #tpu.memory_space<vmem>>, %arg5: memref<8x128xf32, #tpu.memory_space<vmem>>) attributes {dimension_semantics = [#tpu.dimension_semantics<parallel>, #tpu.dimension_semantics<arbitrary>], iteration_bounds = array<i64: 2, 3>, scalar_prefetch = 0 : i64, scratch_operands = 0 : i64, tpu.core_type = #tpu.core_type<tc>, window_params = [{transform_indices = @transform_0, window_bounds = array<i64: 8, 128>}, {transform_indices = @transform_1, window_bounds = array<i64: 2, 128, 128>}, {transform_indices = @transform_2, window_bounds = array<i64: 128, 128>}, {transform_indices = @transform_3, window_bounds = array<i64: 8, 128>}]} {
    %c0 = arith.constant 0 : index
    %c0_0 = arith.constant 0 : index
    %0 = vector.load %arg2[%c0, %c0_0] : memref<8x128xf32, #tpu.memory_space<vmem>>, vector<8x128xf32>
    %1 = arith.truncf %0 : vector<8x128xf32> to vector<8x128xbf16>
    %c0_1 = arith.constant 0 : index
    %c0_2 = arith.constant 0 : index
    %c0_3 = arith.constant 0 : index
    %2 = vector.load %arg3[%c0_1, %c0_2, %c0_3] : memref<2x128x128xbf16, #tpu.memory_space<vmem>>, vector<1x128x128xbf16>
    %3 = vector.shape_cast %2 : vector<1x128x128xbf16> to vector<128x128xbf16>
    %cst = arith.constant dense<0.000000e+00> : vector<8x128xf32>
    %4 = tpu.matmul %1, %3, %cst {dimension_numbers = #tpu.dot_dimension_numbers<[1], [0], [0], [1], [0, 0, 1, 1], [], []>} : vector<8x128xbf16>, vector<128x128xbf16>, vector<8x128xf32> -> vector<8x128xf32>
    %c1 = arith.constant 1 : index
    %c0_4 = arith.constant 0 : index
    %c0_5 = arith.constant 0 : index
    %5 = vector.load %arg3[%c1, %c0_4, %c0_5] : memref<2x128x128xbf16, #tpu.memory_space<vmem>>, vector<1x128x128xbf16>
    %6 = vector.shape_cast %5 : vector<1x128x128xbf16> to vector<128x128xbf16>
    %cst_6 = arith.constant dense<0.000000e+00> : vector<8x128xf32>
    %7 = tpu.matmul %1, %6, %cst_6 {dimension_numbers = #tpu.dot_dimension_numbers<[1], [0], [0], [1], [0, 0, 1, 1], [], []>} : vector<8x128xbf16>, vector<128x128xbf16>, vector<8x128xf32> -> vector<8x128xf32>
    %8 = arith.negf %4 : vector<8x128xf32>
    %9 = math.exp %8 : vector<8x128xf32>
    %cst_7 = arith.constant 1.000000e+00 : f32
    %10 = vector.broadcast %cst_7 : f32 to vector<8x128xf32>
    %11 = arith.addf %10, %9 : vector<8x128xf32>
    %12 = arith.divf %10, %11 : vector<8x128xf32>
    %13 = arith.mulf %4, %12 : vector<8x128xf32>
    %14 = arith.mulf %13, %7 : vector<8x128xf32>
    %15 = arith.truncf %14 : vector<8x128xf32> to vector<8x128xbf16>
    %c0_8 = arith.constant 0 : index
    %c0_9 = arith.constant 0 : index
    %16 = vector.load %arg4[%c0_8, %c0_9] : memref<128x128xbf16, #tpu.memory_space<vmem>>, vector<128x128xbf16>
    %cst_10 = arith.constant dense<0.000000e+00> : vector<8x128xf32>
    %17 = tpu.matmul %15, %16, %cst_10 {dimension_numbers = #tpu.dot_dimension_numbers<[1], [0], [0], [1], [0, 0, 1, 1], [], []>} : vector<8x128xbf16>, vector<128x128xbf16>, vector<8x128xf32> -> vector<8x128xf32>
    %c0_i32 = arith.constant 0 : i32
    %18 = arith.cmpi eq, %arg1, %c0_i32 : i32
    %19 = arith.extui %18 : i1 to i32
    %c0_i32_11 = arith.constant 0 : i32
    %20 = arith.cmpi ne, %19, %c0_i32_11 : i32
    scf.if %20 {
      %c0_14 = arith.constant 0 : index
      %c0_15 = arith.constant 0 : index
      %24 = vector.load %arg5[%c0_14, %c0_15] : memref<8x128xf32, #tpu.memory_space<vmem>>, vector<8x128xf32>
      tpu.vector_store %arg5[%c0_14, %c0_15], %17 {strides = array<i32>} : memref<8x128xf32, #tpu.memory_space<vmem>>, vector<8x128xf32>,
    } else {
    }
    %c0_i32_12 = arith.constant 0 : i32
    %21 = arith.cmpi sgt, %arg1, %c0_i32_12 : i32
    %22 = arith.extui %21 : i1 to i32
    %c0_i32_13 = arith.constant 0 : i32
    %23 = arith.cmpi ne, %22, %c0_i32_13 : i32
    scf.if %23 {
      %c0_14 = arith.constant 0 : index
      %c0_15 = arith.constant 0 : index
      %24 = vector.load %arg5[%c0_14, %c0_15] : memref<8x128xf32, #tpu.memory_space<vmem>>, vector<8x128xf32>
      %25 = arith.addf %24, %17 : vector<8x128xf32>
      %c0_16 = arith.constant 0 : index
      %c0_17 = arith.constant 0 : index
      %26 = vector.load %arg5[%c0_16, %c0_17] : memref<8x128xf32, #tpu.memory_space<vmem>>, vector<8x128xf32>
      tpu.vector_store %arg5[%c0_16, %c0_17], %25 {strides = array<i32>} : memref<8x128xf32, #tpu.memory_space<vmem>>, vector<8x128xf32>,
    } else {
    }
    return
  }
  func.func @transform_0(%arg0: i32, %arg1: i32) -> (i32, i32) {
    %c0_i32 = arith.constant 0 : i32
    %c0_i32_0 = arith.constant 0 : i32
    return %arg0, %c0_i32 : i32, i32
  }
  func.func @transform_1(%arg0: i32, %arg1: i32) -> (i32, i32, i32) {
    %c0_i32 = arith.constant 0 : i32
    %c0_i32_0 = arith.constant 0 : i32
    %c0_i32_1 = arith.constant 0 : i32
    return %c0_i32, %c0_i32_0, %arg1 : i32, i32, i32
  }
  func.func @transform_2(%arg0: i32, %arg1: i32) -> (i32, i32) {
    %c0_i32 = arith.constant 0 : i32
    %c0_i32_0 = arith.constant 0 : i32
    return %arg1, %c0_i32 : i32, i32
  }
  func.func @transform_3(%arg0: i32, %arg1: i32) -> (i32, i32) {
    %c0_i32 = arith.constant 0 : i32
    %c0_i32_0 = arith.constant 0 : i32
    return %arg0, %c0_i32 : i32, i32
  }
}

</mosaic_0001>

<llo_original>
// kernel: tpu_custom_call.1
$region0: #{tpu_custom_call.1}
  #allocation0 [shape = 'u32[]', space=smem, size = 0x4, offset = 0x4, fixed_abs, tag = 'smem constant byte address 0x4 - core index']
  #allocation1 [shape = 'u32[144,128]{1,0:T(1,128)}', space=vmem, size = 0x12000, scoped, tag = 'internal scratch']
  %s0 = inlined_call_operand.hbm [shape: f32[16,128], index: 0, kind: input, shape index: {}]
  %s1 = inlined_call_operand.hbm [shape: bf16[2,128,384], index: 1, kind: input, shape index: {}]
  %s2 = inlined_call_operand.hbm [shape: bf16[384,128], index: 2, kind: input, shape index: {}]
  %s3 = inlined_call_operand.hbm [shape: f32[16,128], index: 3, kind: output, shape index: {}]
  %s4 = sld [smem:[#allocation0]]
  $region65: #{tpu_custom_call.1} parent=0
    _
  %s6 = ssub.s32 1, %s4
  %s7 = scalar_select 0, %s6, %s4
  $region1: #{tpu_custom_call.1} parent=0
    #allocation2 [shape = 'u8[8192]{0}', space=vmem, size = 0x2000, scoped, tag = 'input window, operand 0']
    #allocation3 [shape = 's32[2]{0}', space=sflag, size = 0x8, scoped, tag = 'scoped memory for tpu_custom_call.1']
    #allocation4 [shape = 's32[2]{0}', space=sflag, size = 0x8, scoped, tag = 'scoped memory for tpu_custom_call.1']
    #allocation5 [shape = 'u8[131072]{0}', space=vmem, size = 0x20000, scoped, tag = 'input window, operand 1']
    #allocation6 [shape = 's32[2]{0}', space=sflag, size = 0x8, scoped, tag = 'scoped memory for tpu_custom_call.1']
    #allocation7 [shape = 'u8[65536]{0}', space=vmem, size = 0x10000, scoped, tag = 'input window, operand 2']
    #allocation8 [shape = 'u8[8192]{0}', space=vmem, size = 0x2000, scoped, tag = 'output window, operand 0']
    %8 = vsyncpa [#allocation3], 0
    %s9 = scalar_lea.sflag [#allocation3], 1
    %10 = vsyncpa %s9, 0
    %11 = vsyncpa [#allocation6], 0
    %s12 = scalar_lea.sflag [#allocation6], 1
    %13 = vsyncpa %s12, 0
    %14 = vsyncpa [#allocation4], 0
    %s15 = scalar_lea.sflag [#allocation4], 1
    %16 = vsyncpa %s15, 0
    loop: start=0, step=1, limit=8
    $region2: #{tpu_custom_call.1} parent=1 // loop_pre_header
      _
    $region3: #{tpu_custom_call.1} parent=1 // loop_header
      %s18 = sphi 0, %s22
      %p19 = scmp.ge.s32.totalorder %s18, 8
      %s25 = sphi 0, %s37
      %s26 = sphi 0, %s33
      %s27 = sphi 0, %s25
      %s28 = sphi 0, %s26
      %s29 = sphi 0, %s27
      %s30 = sphi 0, %s28
      %s40 = sphi 0, %s42
      %s43 = sphi 0, %s40
      %s44 = sphi 0, %s43
      %s60 = sphi 0, %s44
      %s66 = sphi 0, %s68
      %s69 = sphi 0, %s66
      %s70 = sphi 0, %s69
      %s86 = sphi 0, %s70
      %s92 = sphi 0, %s94
      %s95 = sphi 0, %s92
      %s96 = sphi 0, %s95
      %s112 = sphi 0, %s96
      %s118 = sphi 0, %s120
      %s121 = sphi 0, %s118
      %s122 = sphi 0, %s121
      %s138 = sphi 0, %s122
    $region4: #{tpu_custom_call.1} parent=1 // loop_header_branch
      %21 = sbr.rel (%p19) target = $region8
    $region5: #{tpu_custom_call.1} parent=1 // loop_body
      %s23 = ssub.s32 %s18, 1
      %s24 = ssub.s32 %s18, 2
      %s31 = sadd.s32 1, %s26
      %p32 = scmp.ge.s32.totalorder %s31, 3
      %s33 = scalar_select %p32, 0, %s31
      %s34 = sadd.s32 1, %s25
      %s35 = scalar_select %p32, %s34, %s25
      %p36 = scmp.ge.s32.totalorder %s35, 2
      %s37 = scalar_select %p36, 0, %s35
      %s38 = ssub.s32 %s25, %s37
      %p39 = scmp.eq.s32.totalorder %s38, 0
      %s41 = sadd.s32 %s40, 1
      %s42 = scalar_select %p39, %s40, %s41
      %p45 = pneg %p39
      %p46 = scmp.eq.s32.totalorder %s18, 5
      %p47 = por %p45, %p46
      %p48 = scmp.ne.s32.totalorder %s40, %s43
      %p49 = scmp.eq.s32.totalorder %s18, 0
      %p50 = por %p48, %p49
      %p51 = scmp.ne.s32.totalorder %s40, %s43
      %p52 = scmp.eq.s32.totalorder %s23, 5
      %p53 = por %p51, %p52
      %p54 = scmp.ne.s32.totalorder %s43, %s44
      %p55 = scmp.eq.s32.totalorder %s23, 0
      %p56 = por %p54, %p55
      %p57 = scmp.ne.s32.totalorder %s43, %s44
      %p58 = scmp.eq.s32.totalorder %s24, 5
      %p59 = por %p57, %p58
      %p61 = scmp.ne.s32.totalorder %s44, %s60
      %p62 = scmp.eq.s32.totalorder %s24, 0
      %p63 = por %p61, %p62
      %s64 = ssub.s32 %s26, %s33
      %p65 = scmp.eq.s32.totalorder %s64, 0
      %s67 = sadd.s32 %s66, 1
      %s68 = scalar_select %p65, %s66, %s67
      %p71 = pneg %p65
      %p72 = scmp.eq.s32.totalorder %s18, 5
      %p73 = por %p71, %p72
      %p74 = scmp.ne.s32.totalorder %s66, %s69
      %p75 = scmp.eq.s32.totalorder %s18, 0
      %p76 = por %p74, %p75
      %p77 = scmp.ne.s32.totalorder %s66, %s69
      %p78 = scmp.eq.s32.totalorder %s23, 5
      %p79 = por %p77, %p78
      %p80 = scmp.ne.s32.totalorder %s69, %s70
      %p81 = scmp.eq.s32.totalorder %s23, 0
      %p82 = por %p80, %p81
      %p83 = scmp.ne.s32.totalorder %s69, %s70
      %p84 = scmp.eq.s32.totalorder %s24, 5
      %p85 = por %p83, %p84
      %p87 = scmp.ne.s32.totalorder %s70, %s86
      %p88 = scmp.eq.s32.totalorder %s24, 0
      %p89 = por %p87, %p88
      %s90 = ssub.s32 %s26, %s33
      %p91 = scmp.eq.s32.totalorder %s90, 0
      %s93 = sadd.s32 %s92, 1
      %s94 = scalar_select %p91, %s92, %s93
      %p97 = pneg %p91
      %p98 = scmp.eq.s32.totalorder %s18, 5
      %p99 = por %p97, %p98
      %p100 = scmp.ne.s32.totalorder %s92, %s95
      %p101 = scmp.eq.s32.totalorder %s18, 0
      %p102 = por %p100, %p101
      %p103 = scmp.ne.s32.totalorder %s92, %s95
      %p104 = scmp.eq.s32.totalorder %s23, 5
      %p105 = por %p103, %p104
      %p106 = scmp.ne.s32.totalorder %s95, %s96
      %p107 = scmp.eq.s32.totalorder %s23, 0
      %p108 = por %p106, %p107
      %p109 = scmp.ne.s32.totalorder %s95, %s96
      %p110 = scmp.eq.s32.totalorder %s24, 5
      %p111 = por %p109, %p110
      %p113 = scmp.ne.s32.totalorder %s96, %s112
      %p114 = scmp.eq.s32.totalorder %s24, 0
      %p115 = por %p113, %p114
      %s116 = ssub.s32 %s25, %s37
      %p117 = scmp.eq.s32.totalorder %s116, 0
      %s119 = sadd.s32 %s118, 1
      %s120 = scalar_select %p117, %s118, %s119
      %p123 = pneg %p117
      %p124 = scmp.eq.s32.totalorder %s18, 5
      %p125 = por %p123, %p124
      %p126 = scmp.ne.s32.totalorder %s118, %s121
      %p127 = scmp.eq.s32.totalorder %s18, 0
      %p128 = por %p126, %p127
      %p129 = scmp.ne.s32.totalorder %s118, %s121
      %p130 = scmp.eq.s32.totalorder %s23, 5
      %p131 = por %p129, %p130
      %p132 = scmp.ne.s32.totalorder %s121, %s122
      %p133 = scmp.eq.s32.totalorder %s23, 0
      %p134 = por %p132, %p133
      %p135 = scmp.ne.s32.totalorder %s121, %s122
      %p136 = scmp.eq.s32.totalorder %s24, 5
      %p137 = por %p135, %p136
      %p139 = scmp.ne.s32.totalorder %s122, %s138
      %p140 = scmp.eq.s32.totalorder %s24, 0
      %p141 = por %p139, %p140
      %p142 = scmp.le.s32.totalorder 1, %s18
      %p143 = scmp.lt.s32.totalorder %s18, 7
      %p144 = pnand %p142, %p143
      %p145 = pneg %p144
      // Predicated region
      $region9: #{tpu_custom_call.1} parent=5 // pred_check
        _
      $region10: #{tpu_custom_call.1} parent=5 // pred_check_branch
        %147 = sbr.rel (%p144) target = $region12
      $region11: #{tpu_custom_call.1} parent=5 // pred_region
        %s148 = ssub.s32 %s18, 1
      $region12: #{tpu_custom_call.1} parent=5 // pred_fallthru
        _
      %p149 = scmp.lt.s32.totalorder %s18, 6
      // Predicated region
      $region13: #{tpu_custom_call.1} parent=5 // pred_check
        %p150 = pneg %p149
      $region14: #{tpu_custom_call.1} parent=5 // pred_check_branch
        %152 = sbr.rel (%p150) target = $region16
      $region15: #{tpu_custom_call.1} parent=5 // pred_region
        // Predicated region
        $region17: #{tpu_custom_call.1} parent=15 // pred_check
          %p153 = pneg %p50
        $region18: #{tpu_custom_call.1} parent=15 // pred_check_branch
          %155 = sbr.rel (%p153) target = $region20
        $region19: #{tpu_custom_call.1} parent=15 // pred_region
          %s156 = sand.u32 %s40, 1
          %s157 = scalar_lea.sflag [#allocation3], %s156
          %s158 = sand.u32 %s40, 1
          %s159 = smul.addr %s158, 8
          %s160 = scalar_lea.vmem [#allocation2], %s159
          %s162 = ssub.s32 128, 128
          %163 = vsyncadd %s157, %s162
          %s164 = smul.addr %s25, 128
          %s165 = scalar_lea.hbm %s0, %s164
          %s167 = sshll.u32 %s160, 4
          %s168 = int_to_ptr.vmem [resolvable:$true] %s167
          %170 = dma.hbm_to_vmem [thread:$0]  %s165, 128, %s168, %s157
        $region20: #{tpu_custom_call.1} parent=15 // pred_fallthru
          _
        // Predicated region
        $region21: #{tpu_custom_call.1} parent=15 // pred_check
          %p171 = pneg %p76
        $region22: #{tpu_custom_call.1} parent=15 // pred_check_branch
          %173 = sbr.rel (%p171) target = $region24
        $region23: #{tpu_custom_call.1} parent=15 // pred_region
          %s174 = sand.u32 %s18, 1
          %s175 = scalar_lea.sflag [#allocation6], %s174
          %s176 = sand.u32 %s66, 1
          %s177 = smul.addr %s176, 128
          %s178 = scalar_lea.vmem [#allocation5], %s177
          %s180 = ssub.s32 2048, 2048
          %181 = vsyncadd %s175, %s180
          %s182 = smul.addr %s26, 64
          %s183 = scalar_lea.hbm %s1, %s182
          %s184 = sshll.u32 %s178, 4
          %s185 = int_to_ptr.vmem [resolvable:$true] %s184
          %190 = dma.hbm_to_vmem [thread:$0]  %s183, 2048, %s185, %s175, 192, 64, 4
        $region24: #{tpu_custom_call.1} parent=15 // pred_fallthru
          _
        // Predicated region
        $region25: #{tpu_custom_call.1} parent=15 // pred_check
          %p191 = pneg %p102
        $region26: #{tpu_custom_call.1} parent=15 // pred_check_branch
          %193 = sbr.rel (%p191) target = $region28
        $region27: #{tpu_custom_call.1} parent=15 // pred_region
          %s194 = sand.u32 %s18, 1
          %s195 = scalar_lea.sflag [#allocation6], %s194
          %s196 = sand.u32 %s92, 1
          %s197 = smul.addr %s196, 64
          %s198 = scalar_lea.vmem [#allocation7], %s197
          %s199 = smul.u32 16, %s26
          %s201 = ssub.s32 1024, 1024
          %202 = vsyncadd %s195, %s201
          %s203 = smul.addr %s199, 64
          %s204 = scalar_lea.hbm %s2, %s203
          %s205 = sshll.u32 %s198, 4
          %s206 = int_to_ptr.vmem [resolvable:$true] %s205
          %211 = dma.hbm_to_vmem [thread:$0]  %s204, 1024, %s206, %s195, 64, 64, 4
        $region28: #{tpu_custom_call.1} parent=15 // pred_fallthru
          _
      $region16: #{tpu_custom_call.1} parent=5 // pred_fallthru
        _
      %p212 = scmp.le.s32.totalorder 1, %s18
      %p213 = scmp.lt.s32.totalorder %s18, 7
      %p214 = pnand %p212, %p213
      %p215 = pneg %p214
      // Predicated region
      $region29: #{tpu_custom_call.1} parent=5 // pred_check
        _
      $region30: #{tpu_custom_call.1} parent=5 // pred_check_branch
        %217 = sbr.rel (%p214) target = $region32
      $region31: #{tpu_custom_call.1} parent=5 // pred_region
        %s218 = ssub.s32 %s18, 1
        %s219 = sand.u32 %s43, 1
        %s220 = scalar_lea.sflag [#allocation3], %s219
        %s221 = sand.u32 %s43, 1
        %s222 = smul.addr %s221, 8
        %s223 = scalar_lea.vmem [#allocation2], %s222
        // Predicated region
        $region33: #{tpu_custom_call.1} parent=31 // pred_check
          %p224 = pneg %p56
        $region34: #{tpu_custom_call.1} parent=31 // pred_check_branch
          %226 = sbr.rel (%p224) target = $region36
        $region35: #{tpu_custom_call.1} parent=31 // pred_region
          %227 = dma.done %s220, 128
        $region36: #{tpu_custom_call.1} parent=31 // pred_fallthru
          _
        %s228 = sand.u32 %s23, 1
        %s229 = scalar_lea.sflag [#allocation6], %s228
        %s230 = sand.u32 %s69, 1
        %s231 = smul.addr %s230, 128
        %s232 = scalar_lea.vmem [#allocation5], %s231
        // Predicated region
        $region37: #{tpu_custom_call.1} parent=31 // pred_check
          %p233 = pneg %p82
        $region38: #{tpu_custom_call.1} parent=31 // pred_check_branch
          %235 = sbr.rel (%p233) target = $region40
        $region39: #{tpu_custom_call.1} parent=31 // pred_region
          %236 = dma.done %s229, 2048
        $region40: #{tpu_custom_call.1} parent=31 // pred_fallthru
          _
        %s237 = sand.u32 %s23, 1
        %s238 = scalar_lea.sflag [#allocation6], %s237
        %s239 = sand.u32 %s95, 1
        %s240 = smul.addr %s239, 64
        %s241 = scalar_lea.vmem [#allocation7], %s240
        // Predicated region
        $region41: #{tpu_custom_call.1} parent=31 // pred_check
          %p242 = pneg %p108
        $region42: #{tpu_custom_call.1} parent=31 // pred_check_branch
          %244 = sbr.rel (%p242) target = $region44
        $region43: #{tpu_custom_call.1} parent=31 // pred_region
          %245 = dma.done %s238, 1024
        $region44: #{tpu_custom_call.1} parent=31 // pred_fallthru
          _
        %s246 = sand.u32 %s43, 1
        %s247 = scalar_lea.sflag [#allocation3], %s246
        %s248 = sand.u32 %s43, 1
        %s249 = smul.addr %s248, 8
        %s250 = scalar_lea.vmem [#allocation2], %s249
        %p251 = pneg %p56
        %p252 = pneg %p53
        %s253 = sand.u32 %s23, 1
        %s254 = scalar_lea.sflag [#allocation6], %s253
        %s255 = sand.u32 %s69, 1
        %s256 = smul.addr %s255, 128
        %s257 = scalar_lea.vmem [#allocation5], %s256
        %p258 = pneg %p82
        %p259 = pneg %p79
        %s260 = sand.u32 %s23, 1
        %s261 = scalar_lea.sflag [#allocation6], %s260
        %s262 = sand.u32 %s95, 1
        %s263 = smul.addr %s262, 64
        %s264 = scalar_lea.vmem [#allocation7], %s263
        %p265 = pneg %p108
        %p266 = pneg %p105
        %p267 = pneg %p134
        %p268 = pneg %p131
        %s269 = sand.u32 %s121, 1
        %s270 = scalar_lea.sflag [#allocation4], %s269
        %s271 = sand.u32 %s121, 1
        %s272 = smul.addr %s271, 8
        %s273 = scalar_lea.vmem [#allocation8], %s272
        %s274 = smul.u32 16, %s28
        %v276 = vld [vmem:[%s223] sm:$0xff]
        %v277 = vpack.c.bf16 %v276, %v276
        %v278 = vld [vmem:[%s232] sm:$0xf]
        %v279 = vld [vmem:[%s232 + $0x4] sm:$0xf]
        %v280 = vld [vmem:[%s232 + $0x8] sm:$0xf]
        %v281 = vld [vmem:[%s232 + $0xc] sm:$0xf]
        %v282 = vld [vmem:[%s232 + $0x10] sm:$0xf]
        %v283 = vld [vmem:[%s232 + $0x14] sm:$0xf]
        %v284 = vld [vmem:[%s232 + $0x18] sm:$0xf]
        %v285 = vld [vmem:[%s232 + $0x1c] sm:$0xf]
        %v286 = vld [vmem:[%s232 + $0x20] sm:$0xf]
        %v287 = vld [vmem:[%s232 + $0x24] sm:$0xf]
        %v288 = vld [vmem:[%s232 + $0x28] sm:$0xf]
        %v289 = vld [vmem:[%s232 + $0x2c] sm:$0xf]
        %v290 = vld [vmem:[%s232 + $0x30] sm:$0xf]
        %v291 = vld [vmem:[%s232 + $0x34] sm:$0xf]
        %v292 = vld [vmem:[%s232 + $0x38] sm:$0xf]
        %v293 = vld [vmem:[%s232 + $0x3c] sm:$0xf]
        %v310 = vunpack.c.l.b16 %v278
        %v311 = vunpack.c.l.b16 %v279
        %v312 = vunpack.c.l.b16 %v280
        %v313 = vunpack.c.l.b16 %v281
        %v314 = vunpack.c.l.b16 %v282
        %v315 = vunpack.c.l.b16 %v283
        %v316 = vunpack.c.l.b16 %v284
        %v317 = vunpack.c.l.b16 %v285
        %v318 = vunpack.c.l.b16 %v286
        %v319 = vunpack.c.l.b16 %v287
        %v320 = vunpack.c.l.b16 %v288
        %v321 = vunpack.c.l.b16 %v289
        %v322 = vunpack.c.l.b16 %v290
        %v323 = vunpack.c.l.b16 %v291
        %v324 = vunpack.c.l.b16 %v292
        %v325 = vunpack.c.l.b16 %v293
        %v326 = vpack.c.b16 %v311, %v310
        %v327 = vpack.c.b16 %v313, %v312
        %v328 = vpack.c.b16 %v315, %v314
        %v329 = vpack.c.b16 %v317, %v316
        %v330 = vpack.c.b16 %v319, %v318
        %v331 = vpack.c.b16 %v321, %v320
        %v332 = vpack.c.b16 %v323, %v322
        %v333 = vpack.c.b16 %v325, %v324
        %342 = vmatprep.subr.bf16.mxu0 0
        %343 = vmatpush1.bf16.msra.mxu0 %v326
        %344 = vmatprep.subr.bf16.mxu0 0
        %345 = vmatpush1.bf16.msra.mxu0 %v327
        %346 = vmatprep.subr.bf16.mxu0 0
        %347 = vmatpush1.bf16.msra.mxu0 %v328
        %348 = vmatprep.subr.bf16.mxu0 0
        %349 = vmatpush1.bf16.msra.mxu0 %v329
        %350 = vmatprep.subr.bf16.mxu0 0
        %351 = vmatpush1.bf16.msra.mxu0 %v330
        %352 = vmatprep.subr.bf16.mxu0 0
        %353 = vmatpush1.bf16.msra.mxu0 %v331
        %354 = vmatprep.subr.bf16.mxu0 0
        %355 = vmatpush1.bf16.msra.mxu0 %v332
        %356 = vmatprep.subr.bf16.mxu0 0
        %357 = vmatpush1.bf16.msra.mxu0 %v333
        %358 = vmatprep.subr.bf16.mxu0 0
        %359 = vmatpush1.bf16.msra.mxu0 0
        %360 = vmatprep.subr.bf16.mxu0 0
        %361 = vmatpush1.bf16.msra.mxu0 0
        %362 = vmatprep.subr.bf16.mxu0 0
        %363 = vmatpush1.bf16.msra.mxu0 0
        %364 = vmatprep.subr.bf16.mxu0 0
        %365 = vmatpush1.bf16.msra.mxu0 0
        %366 = vmatprep.subr.bf16.mxu0 0
        %367 = vmatpush1.bf16.msra.mxu0 0
        %368 = vmatprep.subr.bf16.mxu0 0
        %369 = vmatpush1.bf16.msra.mxu0 0
        %370 = vmatprep.subr.bf16.mxu0 0
        %371 = vmatpush1.bf16.msra.mxu0 0
        %372 = vmatprep.subr.bf16.mxu0 0
        %373 = vmatpush1.bf16.msra.mxu0 0
        %374 = vmatprep.mubr.bf16.mxu0 0
        %375 = vmatmul.mubr.bf16.gmra.mrb[0].mxu0 %v277
        %v376 = vpop.f32.mrb[0].mxu0
        %v377 = vadd.f32 0.0, %v376
        %v378 = vpop.f32.mrb[0].mxu0
        %v379 = vpop.f32.mrb[0].mxu0
        %v380 = vpop.f32.mrb[0].mxu0
        %381 = vdwg.mxu0
        %s382 = scalar_lea.vmem %s232, 64 [#allocation5]
        %v383 = vld [vmem:[%s382] sm:$0xf]
        %v384 = vld [vmem:[%s382 + $0x4] sm:$0xf]
        %v385 = vld [vmem:[%s382 + $0x8] sm:$0xf]
        %v386 = vld [vmem:[%s382 + $0xc] sm:$0xf]
        %v387 = vld [vmem:[%s382 + $0x10] sm:$0xf]
        %v388 = vld [vmem:[%s382 + $0x14] sm:$0xf]
        %v389 = vld [vmem:[%s382 + $0x18] sm:$0xf]
        %v390 = vld [vmem:[%s382 + $0x1c] sm:$0xf]
        %v391 = vld [vmem:[%s382 + $0x20] sm:$0xf]
        %v392 = vld [vmem:[%s382 + $0x24] sm:$0xf]
        %v393 = vld [vmem:[%s382 + $0x28] sm:$0xf]
        %v394 = vld [vmem:[%s382 + $0x2c] sm:$0xf]
        %v395 = vld [vmem:[%s382 + $0x30] sm:$0xf]
        %v396 = vld [vmem:[%s382 + $0x34] sm:$0xf]
        %v397 = vld [vmem:[%s382 + $0x38] sm:$0xf]
        %v398 = vld [vmem:[%s382 + $0x3c] sm:$0xf]
        %v415 = vunpack.c.l.b16 %v383
        %v416 = vunpack.c.l.b16 %v384
        %v417 = vunpack.c.l.b16 %v385
        %v418 = vunpack.c.l.b16 %v386
        %v419 = vunpack.c.l.b16 %v387
        %v420 = vunpack.c.l.b16 %v388
        %v421 = vunpack.c.l.b16 %v389
        %v422 = vunpack.c.l.b16 %v390
        %v423 = vunpack.c.l.b16 %v391
        %v424 = vunpack.c.l.b16 %v392
        %v425 = vunpack.c.l.b16 %v393
        %v426 = vunpack.c.l.b16 %v394
        %v427 = vunpack.c.l.b16 %v395
        %v428 = vunpack.c.l.b16 %v396
        %v429 = vunpack.c.l.b16 %v397
        %v430 = vunpack.c.l.b16 %v398
        %v431 = vpack.c.b16 %v416, %v415
        %v432 = vpack.c.b16 %v418, %v417
        %v433 = vpack.c.b16 %v420, %v419
        %v434 = vpack.c.b16 %v422, %v421
        %v435 = vpack.c.b16 %v424, %v423
        %v436 = vpack.c.b16 %v426, %v425
        %v437 = vpack.c.b16 %v428, %v427
        %v438 = vpack.c.b16 %v430, %v429
        %447 = vmatprep.subr.bf16.mxu0 0
        %448 = vmatpush1.bf16.msra.mxu0 %v431
        %449 = vmatprep.subr.bf16.mxu0 0
        %450 = vmatpush1.bf16.msra.mxu0 %v432
        %451 = vmatprep.subr.bf16.mxu0 0
        %452 = vmatpush1.bf16.msra.mxu0 %v433
        %453 = vmatprep.subr.bf16.mxu0 0
        %454 = vmatpush1.bf16.msra.mxu0 %v434
        %455 = vmatprep.subr.bf16.mxu0 0
        %456 = vmatpush1.bf16.msra.mxu0 %v435
        %457 = vmatprep.subr.bf16.mxu0 0
        %458 = vmatpush1.bf16.msra.mxu0 %v436
        %459 = vmatprep.subr.bf16.mxu0 0
        %460 = vmatpush1.bf16.msra.mxu0 %v437
        %461 = vmatprep.subr.bf16.mxu0 0
        %462 = vmatpush1.bf16.msra.mxu0 %v438
        %463 = vmatprep.subr.bf16.mxu0 0
        %464 = vmatpush1.bf16.msra.mxu0 0
        %465 = vmatprep.subr.bf16.mxu0 0
        %466 = vmatpush1.bf16.msra.mxu0 0
        %467 = vmatprep.subr.bf16.mxu0 0
        %468 = vmatpush1.bf16.msra.mxu0 0
        %469 = vmatprep.subr.bf16.mxu0 0
        %470 = vmatpush1.bf16.msra.mxu0 0
        %471 = vmatprep.subr.bf16.mxu0 0
        %472 = vmatpush1.bf16.msra.mxu0 0
        %473 = vmatprep.subr.bf16.mxu0 0
        %474 = vmatpush1.bf16.msra.mxu0 0
        %475 = vmatprep.subr.bf16.mxu0 0
        %476 = vmatpush1.bf16.msra.mxu0 0
        %477 = vmatprep.subr.bf16.mxu0 0
        %478 = vmatpush1.bf16.msra.mxu0 0
        %479 = vmatprep.mubr.bf16.mxu0 0
        %480 = vmatmul.mubr.bf16.gmra.mrb[0].mxu0 %v277
        %v481 = vpop.f32.mrb[0].mxu0
        %v482 = vadd.f32 0.0, %v481
        %v483 = vpop.f32.mrb[0].mxu0
        %v484 = vpop.f32.mrb[0].mxu0
        %v485 = vpop.f32.mrb[0].mxu0
        %486 = vdwg.mxu0
        %v487 = vxor.u32 %v377, 2147483648
        %v488 = vmul.f32 %v487, 1.442695
        %v489 = vpow.pop %v488
        %v490 = vadd.f32 %v489, 1.0
        %v491 = vrcp.pop %v490
        %v492 = vmul.f32 1.0, %v491
        %v493 = vmul.f32 %v377, %v492
        %v494 = vmul.f32 %v493, %v482
        %v495 = vpack.c.bf16 %v494, %v494
        %v496 = vld [vmem:[%s241] sm:$0xf]
        %v497 = vld [vmem:[%s241 + $0x4] sm:$0xf]
        %v498 = vld [vmem:[%s241 + $0x8] sm:$0xf]
        %v499 = vld [vmem:[%s241 + $0xc] sm:$0xf]
        %v500 = vld [vmem:[%s241 + $0x10] sm:$0xf]
        %v501 = vld [vmem:[%s241 + $0x14] sm:$0xf]
        %v502 = vld [vmem:[%s241 + $0x18] sm:$0xf]
        %v503 = vld [vmem:[%s241 + $0x1c] sm:$0xf]
        %v504 = vld [vmem:[%s241 + $0x20] sm:$0xf]
        %v505 = vld [vmem:[%s241 + $0x24] sm:$0xf]
        %v506 = vld [vmem:[%s241 + $0x28] sm:$0xf]
        %v507 = vld [vmem:[%s241 + $0x2c] sm:$0xf]
        %v508 = vld [vmem:[%s241 + $0x30] sm:$0xf]
        %v509 = vld [vmem:[%s241 + $0x34] sm:$0xf]
        %v510 = vld [vmem:[%s241 + $0x38] sm:$0xf]
        %v511 = vld [vmem:[%s241 + $0x3c] sm:$0xf]
        %v528 = vunpack.c.l.b16 %v496
        %v529 = vunpack.c.l.b16 %v497
        %v530 = vunpack.c.l.b16 %v498
        %v531 = vunpack.c.l.b16 %v499
        %v532 = vunpack.c.l.b16 %v500
        %v533 = vunpack.c.l.b16 %v501
        %v534 = vunpack.c.l.b16 %v502
        %v535 = vunpack.c.l.b16 %v503
        %v536 = vunpack.c.l.b16 %v504
        %v537 = vunpack.c.l.b16 %v505
        %v538 = vunpack.c.l.b16 %v506
        %v539 = vunpack.c.l.b16 %v507
        %v540 = vunpack.c.l.b16 %v508
        %v541 = vunpack.c.l.b16 %v509
        %v542 = vunpack.c.l.b16 %v510
        %v543 = vunpack.c.l.b16 %v511
        %v544 = vpack.c.b16 %v529, %v528
        %v545 = vpack.c.b16 %v531, %v530
        %v546 = vpack.c.b16 %v533, %v532
        %v547 = vpack.c.b16 %v535, %v534
        %v548 = vpack.c.b16 %v537, %v536
        %v549 = vpack.c.b16 %v539, %v538
        %v550 = vpack.c.b16 %v541, %v540
        %v551 = vpack.c.b16 %v543, %v542
        %560 = vmatprep.subr.bf16.mxu0 0
        %561 = vmatpush1.bf16.msra.mxu0 %v544
        %562 = vmatprep.subr.bf16.mxu0 0
        %563 = vmatpush1.bf16.msra.mxu0 %v545
        %564 = vmatprep.subr.bf16.mxu0 0
        %565 = vmatpush1.bf16.msra.mxu0 %v546
        %566 = vmatprep.subr.bf16.mxu0 0
        %567 = vmatpush1.bf16.msra.mxu0 %v547
        %568 = vmatprep.subr.bf16.mxu0 0
        %569 = vmatpush1.bf16.msra.mxu0 %v548
        %570 = vmatprep.subr.bf16.mxu0 0
        %571 = vmatpush1.bf16.msra.mxu0 %v549
        %572 = vmatprep.subr.bf16.mxu0 0
        %573 = vmatpush1.bf16.msra.mxu0 %v550
        %574 = vmatprep.subr.bf16.mxu0 0
        %575 = vmatpush1.bf16.msra.mxu0 %v551
        %576 = vmatprep.subr.bf16.mxu0 0
        %577 = vmatpush1.bf16.msra.mxu0 0
        %578 = vmatprep.subr.bf16.mxu0 0
        %579 = vmatpush1.bf16.msra.mxu0 0
        %580 = vmatprep.subr.bf16.mxu0 0
        %581 = vmatpush1.bf16.msra.mxu0 0
        %582 = vmatprep.subr.bf16.mxu0 0
        %583 = vmatpush1.bf16.msra.mxu0 0
        %584 = vmatprep.subr.bf16.mxu0 0
        %585 = vmatpush1.bf16.msra.mxu0 0
        %586 = vmatprep.subr.bf16.mxu0 0
        %587 = vmatpush1.bf16.msra.mxu0 0
        %588 = vmatprep.subr.bf16.mxu0 0
        %589 = vmatpush1.bf16.msra.mxu0 0
        %590 = vmatprep.subr.bf16.mxu0 0
        %591 = vmatpush1.bf16.msra.mxu0 0
        %592 = vmatprep.mubr.bf16.mxu0 0
        %593 = vmatmul.mubr.bf16.gmra.mrb[0].mxu0 %v495
        %v594 = vpop.f32.mrb[0].mxu0
        %v595 = vadd.f32 0.0, %v594
        %v596 = vpop.f32.mrb[0].mxu0
        %v597 = vpop.f32.mrb[0].mxu0
        %v598 = vpop.f32.mrb[0].mxu0
        %599 = vdwg.mxu0
        %p600 = scmp.eq.s32.totalorder %s28, 0
        // Predicated region
        $region45: #{tpu_custom_call.1} parent=31 // pred_check
          %p601 = pneg %p600
        $region46: #{tpu_custom_call.1} parent=31 // pred_check_branch
          %603 = sbr.rel (%p601) target = $region48
        $region47: #{tpu_custom_call.1} parent=31 // pred_region
          %604 = vst [vmem:[%s273] sm:$0xff] %v595
        $region48: #{tpu_custom_call.1} parent=31 // pred_fallthru
          _
        %p605 = scmp.gt.s32.totalorder %s28, 0
        // Predicated region
        $region49: #{tpu_custom_call.1} parent=31 // pred_check
          %p606 = pneg %p605
        $region50: #{tpu_custom_call.1} parent=31 // pred_check_branch
          %608 = sbr.rel (%p606) target = $region52
        $region51: #{tpu_custom_call.1} parent=31 // pred_region
          %v609 = vld [vmem:[%s273] sm:$0xff]
          %v610 = vadd.f32 %v609, %v595
          %611 = vst [vmem:[%s273] sm:$0xff] %v610
        $region52: #{tpu_custom_call.1} parent=31 // pred_fallthru
          _
        %s612 = sand.u32 %s121, 1
        %s613 = scalar_lea.sflag [#allocation4], %s612
        %s614 = sand.u32 %s121, 1
        %s615 = smul.addr %s614, 8
        %s616 = scalar_lea.vmem [#allocation8], %s615
        // Predicated region
        $region53: #{tpu_custom_call.1} parent=31 // pred_check
          %p617 = pneg %p131
        $region54: #{tpu_custom_call.1} parent=31 // pred_check_branch
          %619 = sbr.rel (%p617) target = $region56
        $region55: #{tpu_custom_call.1} parent=31 // pred_region
          %s621 = ssub.s32 128, 128
          %622 = vsyncadd %s613, %s621
          %s623 = smul.addr %s27, 128
          %s624 = scalar_lea.hbm %s3, %s623
          %s626 = sshll.u32 %s616, 4
          %s627 = int_to_ptr.vmem [resolvable:$true] %s626
          %629 = dma.vmem_to_hbm [thread:$0]  %s627, 128, %s624, %s613
        $region56: #{tpu_custom_call.1} parent=31 // pred_fallthru
          _
      $region32: #{tpu_custom_call.1} parent=5 // pred_fallthru
        _
      %p630 = scmp.le.s32.totalorder 2, %s18
      // Predicated region
      $region57: #{tpu_custom_call.1} parent=5 // pred_check
        %p631 = pneg %p630
      $region58: #{tpu_custom_call.1} parent=5 // pred_check_branch
        %633 = sbr.rel (%p631) target = $region60
      $region59: #{tpu_custom_call.1} parent=5 // pred_region
        %s634 = ssub.s32 %s18, 2
        // Predicated region
        $region61: #{tpu_custom_call.1} parent=59 // pred_check
          %p635 = pneg %p137
        $region62: #{tpu_custom_call.1} parent=59 // pred_check_branch
          %637 = sbr.rel (%p635) target = $region64
        $region63: #{tpu_custom_call.1} parent=59 // pred_region
          %s638 = sand.u32 %s122, 1
          %s639 = scalar_lea.sflag [#allocation4], %s638
          %s640 = sand.u32 %s122, 1
          %s641 = smul.addr %s640, 8
          %s642 = scalar_lea.vmem [#allocation8], %s641
          %643 = dma.done %s639, 128
        $region64: #{tpu_custom_call.1} parent=59 // pred_fallthru
          _
      $region60: #{tpu_custom_call.1} parent=5 // pred_fallthru
        _
    $region6: #{tpu_custom_call.1} parent=1 // loop_footer
      %s22 = sadd.s32 1, %s18
    $region7: #{tpu_custom_call.1} parent=1 // loop_footer_branch
      %17 = sbr.rel target = $region3
    $region8: #{tpu_custom_call.1} parent=1 // loop_exit
      _
    %644 = vsyncpa [#allocation3], 1
    %s645 = scalar_lea.sflag [#allocation3], 1
    %646 = vsyncpa %s645, 1
    %647 = vsyncpa [#allocation6], 1
    %s648 = scalar_lea.sflag [#allocation6], 1
    %649 = vsyncpa %s648, 1
    %650 = vsyncpa [#allocation4], 1
    %s651 = scalar_lea.sflag [#allocation4], 1
    %652 = vsyncpa %s651, 1

</llo_original>
